<compile_context>
chip_gen: v7x
topology: tpu7x:2x2x1
jax: 0.10.0
libtpu: 0.0.40
codegen_flags: <defaults>
</compile_context>

<pallas_src>
import functools

import jax
import jax.numpy as jnp
from jax.experimental import pallas as pl
from jax.experimental.pallas import tpu as pltpu

LOG_STD_MIN = -20.0
LOG_STD_MAX = 2.0

_MAX_TILE_B = 1024  # multiple of 256 (fills MXU M on v6e/v7x; also /128 for v5e)


def _round_up(x, m):
    return (x + m - 1) // m * m


def soft_actor_kernel(x_ref, w1_ref, b1_ref, w2_ref, b2_ref, w3_ref, b3_ref,
                      out_ref, *, action_dim, compute_dtype):
    x = x_ref[...].astype(compute_dtype)

    h1 = jnp.tanh(
        jnp.dot(x, w1_ref[...], preferred_element_type=jnp.float32) + b1_ref[...])
    h2 = jnp.tanh(
        jnp.dot(h1.astype(compute_dtype), w2_ref[...],
                preferred_element_type=jnp.float32) + b2_ref[...])

    # Single fused head: lanes [0, A) are the mean, lanes [A, 2A) are log_std.
    out = (jnp.dot(h2.astype(compute_dtype), w3_ref[...],
                   preferred_element_type=jnp.float32) + b3_ref[...])

    # std = exp(clamp(log_std)) on the second half; mean passes through.
    # 2A << 128 lanes, so both halves live in the same vreg: this is a cheap
    # VPU select on a lane-index mask (no slicing / concat / XLU work), and the
    # exp over the mean lanes is free (same vreg push on the EUP).
    std = jnp.exp(jnp.clip(out, LOG_STD_MIN, LOG_STD_MAX))
    lane = jax.lax.broadcasted_iota(jnp.int32, out.shape, 1)
    out_ref[...] = jnp.where(lane >= action_dim, std, out).astype(out_ref.dtype)


def soft_actor_forward(state, params, *, use_bf16=False):
    """Returns (policy_mean, policy_std) parametrizing the TanhNormal policy."""
    w1, b1, w2, b2, w3, b3 = (params[k] for k in ("w1", "b1", "w2", "b2", "w3", "b3"))
    B, state_dim = state.shape
    hidden = w1.shape[1]
    two_a = w3.shape[1]
    action_dim = two_a // 2

    compute_dtype = jnp.bfloat16 if use_bf16 else jnp.float32
    w1c, w2c, w3c = (w.astype(compute_dtype) for w in (w1, w2, w3))

    # Batch tiling: fill the MXU M dimension, cap tile for VMEM headroom.
    tile_b = min(_MAX_TILE_B, _round_up(B, 256))
    b_pad = _round_up(B, tile_b)
    if b_pad != B:
        state = jnp.pad(state, ((0, b_pad - B), (0, 0)))

    kernel = functools.partial(
        soft_actor_kernel, action_dim=action_dim, compute_dtype=compute_dtype)

    out = pl.pallas_call(
        kernel,
        out_shape=jax.ShapeDtypeStruct((b_pad, two_a), jnp.float32),
        grid_spec=pltpu.PrefetchScalarGridSpec(
            num_scalar_prefetch=0,
            grid=(b_pad // tile_b,),
            in_specs=[
                pl.BlockSpec((tile_b, state_dim), lambda i: (i, 0)),
                pl.BlockSpec((state_dim, hidden), lambda i: (0, 0)),
                pl.BlockSpec((1, hidden), lambda i: (0, 0)),
                pl.BlockSpec((hidden, hidden), lambda i: (0, 0)),
                pl.BlockSpec((1, hidden), lambda i: (0, 0)),
                pl.BlockSpec((hidden, two_a), lambda i: (0, 0)),
                pl.BlockSpec((1, two_a), lambda i: (0, 0)),
            ],
            out_specs=pl.BlockSpec((tile_b, two_a), lambda i: (i, 0)),
        ),
        compiler_params=pltpu.CompilerParams(
            dimension_semantics=("parallel",)),  # v7x: shard batch over 2 TCs
    )(state, w1c, b1, w2c, b2, w3c, b3)

    mean = out[:B, :action_dim]
    std = out[:B, action_dim:]
    return mean, std


def init_params(key, state_dim, hidden_size, action_dim):
    """Deterministic synthetic init.  Weights kept in [in, out] layout."""
    ks = jax.random.split(key, 6)

    def u(k, shape, fan_in):
        bound = 1.0 / jnp.sqrt(fan_in)
        return jax.random.uniform(k, shape, jnp.float32, -bound, bound)

    return {
        "w1": u(ks[0], (state_dim, hidden_size), state_dim),
        "b1": u(ks[1], (1, hidden_size), state_dim),
        "w2": u(ks[2], (hidden_size, hidden_size), hidden_size),
        "b2": u(ks[3], (1, hidden_size), hidden_size),
        "w3": u(ks[4], (hidden_size, 2 * action_dim), hidden_size),
        "b3": u(ks[5], (1, 2 * action_dim), hidden_size),
    }


def soft_actor_reference(state, params):
    """Pure-JAX reference of the PyTorch forward (for correctness check)."""
    h1 = jnp.tanh(state @ params["w1"] + params["b1"])
    h2 = jnp.tanh(h1 @ params["w2"] + params["b2"])
    out = h2 @ params["w3"] + params["b3"]
    action_dim = out.shape[1] // 2
    mean, log_std = out[:, :action_dim], out[:, action_dim:]
    log_std = jnp.clip(log_std, LOG_STD_MIN, LOG_STD_MAX)
    return mean, jnp.exp(log_std)


# TODO(synk): TanhNormal.sample/rsample/log_prob are stochastic distribution
# methods; they are not part of the deterministic forward and are left to JAX.

if __name__ == "__main__":
    key = jax.random.PRNGKey(0)
    k_param, k_state, k_big = jax.random.split(key, 3)

    batch, state_dim, hidden_size, action_dim = 2, 3, 32, 1
    params = init_params(k_param, state_dim, hidden_size, action_dim)
    state = jax.random.normal(k_state, (batch, state_dim), jnp.float32)

    mean, std = soft_actor_forward(state, params)
    jax.block_until_ready((mean, std))

    ref_mean, ref_std = soft_actor_reference(state, params)
    assert mean.shape == (batch, action_dim) and std.shape == (batch, action_dim)
    assert jnp.allclose(mean, ref_mean, atol=1e-5, rtol=1e-5)
    assert jnp.allclose(std, ref_std, atol=1e-5, rtol=1e-5)

    # Exercise the multi-step batch grid (padding + pipelined tiles).
    big_batch = 2053
    big_state = jax.random.normal(k_big, (big_batch, state_dim), jnp.float32)
    b_mean, b_std = soft_actor_forward(big_state, params)
    jax.block_until_ready((b_mean, b_std))
    rb_mean, rb_std = soft_actor_reference(big_state, params)
    assert b_mean.shape == (big_batch, action_dim)
    assert jnp.allclose(b_mean, rb_mean, atol=1e-5, rtol=1e-5)
    assert jnp.allclose(b_std, rb_std, atol=1e-5, rtol=1e-5)

    print("KERNEL_OK")
</pallas_src>

<mosaic_0001>
module attributes {stable_mosaic.version = 11 : i64} {
  func.func @soft_actor_kernel(%arg0: i32, %arg1: memref<256x3xf32, #tpu.memory_space<vmem>>, %arg2: memref<3x32xf32, #tpu.memory_space<vmem>>, %arg3: memref<1x32xf32, #tpu.memory_space<vmem>>, %arg4: memref<32x32xf32, #tpu.memory_space<vmem>>, %arg5: memref<1x32xf32, #tpu.memory_space<vmem>>, %arg6: memref<32x2xf32, #tpu.memory_space<vmem>>, %arg7: memref<1x2xf32, #tpu.memory_space<vmem>>, %arg8: memref<256x2xf32, #tpu.memory_space<vmem>>) attributes {dimension_semantics = [#tpu.dimension_semantics<parallel>], iteration_bounds = array<i64: 1>, scalar_prefetch = 0 : i64, scratch_operands = 0 : i64, tpu.core_type = #tpu.core_type<tc>, window_params = [{transform_indices = @transform_0, window_bounds = array<i64: 256, 3>}, {pipeline_mode = #tpu.pipeline_mode<synchronous>, transform_indices = @transform_1, window_bounds = array<i64: 3, 32>}, {pipeline_mode = #tpu.pipeline_mode<synchronous>, transform_indices = @transform_2, window_bounds = array<i64: 1, 32>}, {pipeline_mode = #tpu.pipeline_mode<synchronous>, transform_indices = @transform_3, window_bounds = array<i64: 32, 32>}, {pipeline_mode = #tpu.pipeline_mode<synchronous>, transform_indices = @transform_4, window_bounds = array<i64: 1, 32>}, {pipeline_mode = #tpu.pipeline_mode<synchronous>, transform_indices = @transform_5, window_bounds = array<i64: 32, 2>}, {pipeline_mode = #tpu.pipeline_mode<synchronous>, transform_indices = @transform_6, window_bounds = array<i64: 1, 2>}, {transform_indices = @transform_7, window_bounds = array<i64: 256, 2>}]} {
    %c0 = arith.constant 0 : index
    %c0_0 = arith.constant 0 : index
    %0 = vector.load %arg1[%c0, %c0_0] : memref<256x3xf32, #tpu.memory_space<vmem>>, vector<256x3xf32>
    %c0_1 = arith.constant 0 : index
    %c0_2 = arith.constant 0 : index
    %1 = vector.load %arg2[%c0_1, %c0_2] : memref<3x32xf32, #tpu.memory_space<vmem>>, vector<3x32xf32>
    %cst = arith.constant dense<0.000000e+00> : vector<256x32xf32>
    %2 = tpu.matmul %0, %1, %cst {dimension_numbers = #tpu.dot_dimension_numbers<[1], [0], [0], [1], [0, 0, 1, 1], [], []>} : vector<256x3xf32>, vector<3x32xf32>, vector<256x32xf32> -> vector<256x32xf32>
    %c0_3 = arith.constant 0 : index
    %c0_4 = arith.constant 0 : index
    %3 = vector.load %arg3[%c0_3, %c0_4] : memref<1x32xf32, #tpu.memory_space<vmem>>, vector<1x32xf32>
    %4 = vector.broadcast %3 : vector<1x32xf32> to vector<256x32xf32>
    %5 = arith.addf %2, %4 : vector<256x32xf32>
    %6 = math.tanh %5 : vector<256x32xf32>
    %c0_5 = arith.constant 0 : index
    %c0_6 = arith.constant 0 : index
    %7 = vector.load %arg4[%c0_5, %c0_6] : memref<32x32xf32, #tpu.memory_space<vmem>>, vector<32x32xf32>
    %cst_7 = arith.constant dense<0.000000e+00> : vector<256x32xf32>
    %8 = tpu.matmul %6, %7, %cst_7 {dimension_numbers = #tpu.dot_dimension_numbers<[1], [0], [0], [1], [0, 0, 1, 1], [], []>} : vector<256x32xf32>, vector<32x32xf32>, vector<256x32xf32> -> vector<256x32xf32>
    %c0_8 = arith.constant 0 : index
    %c0_9 = arith.constant 0 : index
    %9 = vector.load %arg5[%c0_8, %c0_9] : memref<1x32xf32, #tpu.memory_space<vmem>>, vector<1x32xf32>
    %10 = vector.broadcast %9 : vector<1x32xf32> to vector<256x32xf32>
    %11 = arith.addf %8, %10 : vector<256x32xf32>
    %12 = math.tanh %11 : vector<256x32xf32>
    %c0_10 = arith.constant 0 : index
    %c0_11 = arith.constant 0 : index
    %13 = vector.load %arg6[%c0_10, %c0_11] : memref<32x2xf32, #tpu.memory_space<vmem>>, vector<32x2xf32>
    %cst_12 = arith.constant dense<0.000000e+00> : vector<256x2xf32>
    %14 = tpu.matmul %12, %13, %cst_12 {dimension_numbers = #tpu.dot_dimension_numbers<[1], [0], [0], [1], [0, 0, 1, 1], [], []>} : vector<256x32xf32>, vector<32x2xf32>, vector<256x2xf32> -> vector<256x2xf32>
    %c0_13 = arith.constant 0 : index
    %c0_14 = arith.constant 0 : index
    %15 = vector.load %arg7[%c0_13, %c0_14] : memref<1x2xf32, #tpu.memory_space<vmem>>, vector<1x2xf32>
    %16 = vector.broadcast %15 : vector<1x2xf32> to vector<256x2xf32>
    %17 = arith.addf %14, %16 : vector<256x2xf32>
    %cst_15 = arith.constant -2.000000e+01 : f32
    %cst_16 = arith.constant 2.000000e+00 : f32
    %18 = vector.broadcast %cst_15 : f32 to vector<256x2xf32>
    %19 = arith.maximumf %18, %17 : vector<256x2xf32>
    %20 = vector.broadcast %cst_16 : f32 to vector<256x2xf32>
    %21 = arith.minimumf %20, %19 : vector<256x2xf32>
    %22 = math.exp %21 : vector<256x2xf32>
    %23 = tpu.iota {dimensions = array<i32: 1>} : vector<256x2xi32>
    %c1_i32 = arith.constant 1 : i32
    %24 = vector.broadcast %c1_i32 : i32 to vector<256x2xi32>
    %25 = arith.cmpi sge, %23, %24 : vector<256x2xi32>
    %26 = arith.select %25, %22, %17 : vector<256x2xi1>, vector<256x2xf32>
    %c0_17 = arith.constant 0 : index
    %c0_18 = arith.constant 0 : index
    %27 = vector.load %arg8[%c0_17, %c0_18] : memref<256x2xf32, #tpu.memory_space<vmem>>, vector<256x2xf32>
    tpu.vector_store %arg8[%c0_17, %c0_18], %26 {strides = array<i32>} : memref<256x2xf32, #tpu.memory_space<vmem>>, vector<256x2xf32>,
    return
  }
  func.func @transform_0(%arg0: i32) -> (i32, i32) {
    %c0_i32 = arith.constant 0 : i32
    %c0_i32_0 = arith.constant 0 : i32
    return %arg0, %c0_i32 : i32, i32
  }
  func.func @transform_1(%arg0: i32) -> (i32, i32) {
    %c0_i32 = arith.constant 0 : i32
    %c0_i32_0 = arith.constant 0 : i32
    %c0_i32_1 = arith.constant 0 : i32
    return %c0_i32, %c0_i32_0 : i32, i32
  }
  func.func @transform_2(%arg0: i32) -> (i32, i32) {
    %c0_i32 = arith.constant 0 : i32
    %c0_i32_0 = arith.constant 0 : i32
    %c0_i32_1 = arith.constant 0 : i32
    return %c0_i32, %c0_i32_0 : i32, i32
  }
  func.func @transform_3(%arg0: i32) -> (i32, i32) {
    %c0_i32 = arith.constant 0 : i32
    %c0_i32_0 = arith.constant 0 : i32
    %c0_i32_1 = arith.constant 0 : i32
    return %c0_i32, %c0_i32_0 : i32, i32
  }
  func.func @transform_4(%arg0: i32) -> (i32, i32) {
    %c0_i32 = arith.constant 0 : i32
    %c0_i32_0 = arith.constant 0 : i32
    %c0_i32_1 = arith.constant 0 : i32
    return %c0_i32, %c0_i32_0 : i32, i32
  }
  func.func @transform_5(%arg0: i32) -> (i32, i32) {
    %c0_i32 = arith.constant 0 : i32
    %c0_i32_0 = arith.constant 0 : i32
    %c0_i32_1 = arith.constant 0 : i32
    return %c0_i32, %c0_i32_0 : i32, i32
  }
  func.func @transform_6(%arg0: i32) -> (i32, i32) {
    %c0_i32 = arith.constant 0 : i32
    %c0_i32_0 = arith.constant 0 : i32
    %c0_i32_1 = arith.constant 0 : i32
    return %c0_i32, %c0_i32_0 : i32, i32
  }
  func.func @transform_7(%arg0: i32) -> (i32, i32) {
    %c0_i32 = arith.constant 0 : i32
    %c0_i32_0 = arith.constant 0 : i32
    return %arg0, %c0_i32 : i32, i32
  }
}

</mosaic_0001>

<llo_original>
// kernel: tpu_custom_call.1
$region0: #{tpu_custom_call.1}
  #allocation0 [shape = 'u32[]', space=smem, size = 0x4, offset = 0x4, fixed_abs, tag = 'smem constant byte address 0x4 - core index']
  #allocation1 [shape = 'u32[144,128]{1,0:T(1,128)}', space=vmem, size = 0x12000, scoped, tag = 'internal scratch']
  %s0 = inlined_call_operand.vmem [shape: f32[256,3], index: 0, kind: input, shape index: {}]
  %s1 = inlined_call_operand.vmem [shape: f32[3,32], index: 1, kind: input, shape index: {}]
  %s2 = inlined_call_operand.vmem [shape: f32[1,32], index: 2, kind: input, shape index: {}]
  %s3 = inlined_call_operand.vmem [shape: f32[32,32], index: 3, kind: input, shape index: {}]
  %s4 = inlined_call_operand.vmem [shape: f32[1,32], index: 4, kind: input, shape index: {}]
  %s5 = inlined_call_operand.vmem [shape: f32[32,2], index: 5, kind: input, shape index: {}]
  %s6 = inlined_call_operand.vmem [shape: f32[1,2], index: 6, kind: input, shape index: {}]
  %s7 = inlined_call_operand.vmem [shape: f32[256,2], index: 7, kind: output, shape index: {}]
  %s8 = sld [smem:[#allocation0]]
  $region38: #{tpu_custom_call.1} parent=0
    _
  %s10 = ssub.s32 1, %s8
  %s11 = scalar_select 0, %s10, %s8
  // Predicated region
  $region2: #{tpu_custom_call.1} parent=0 // pred_check
    _
  $region3: #{tpu_custom_call.1} parent=0 // pred_check_branch
    %13 = sbr.rel (0) target = $region5
  $region4: #{tpu_custom_call.1} parent=0 // pred_region
    _
  $region5: #{tpu_custom_call.1} parent=0 // pred_fallthru
    _
  // Predicated region
  $region6: #{tpu_custom_call.1} parent=0 // pred_check
    _
  $region7: #{tpu_custom_call.1} parent=0 // pred_check_branch
    %15 = sbr.rel (0) target = $region9
  $region8: #{tpu_custom_call.1} parent=0 // pred_region
    _
  $region9: #{tpu_custom_call.1} parent=0 // pred_fallthru
    _
  // Predicated region
  $region10: #{tpu_custom_call.1} parent=0 // pred_check
    _
  $region11: #{tpu_custom_call.1} parent=0 // pred_check_branch
    %17 = sbr.rel (0) target = $region13
  $region12: #{tpu_custom_call.1} parent=0 // pred_region
    _
  $region13: #{tpu_custom_call.1} parent=0 // pred_fallthru
    _
  // Predicated region
  $region14: #{tpu_custom_call.1} parent=0 // pred_check
    _
  $region15: #{tpu_custom_call.1} parent=0 // pred_check_branch
    %19 = sbr.rel (0) target = $region17
  $region16: #{tpu_custom_call.1} parent=0 // pred_region
    _
  $region17: #{tpu_custom_call.1} parent=0 // pred_fallthru
    _
  // Predicated region
  $region18: #{tpu_custom_call.1} parent=0 // pred_check
    _
  $region19: #{tpu_custom_call.1} parent=0 // pred_check_branch
    %21 = sbr.rel (0) target = $region21
  $region20: #{tpu_custom_call.1} parent=0 // pred_region
    _
  $region21: #{tpu_custom_call.1} parent=0 // pred_fallthru
    _
  // Predicated region
  $region22: #{tpu_custom_call.1} parent=0 // pred_check
    _
  $region23: #{tpu_custom_call.1} parent=0 // pred_check_branch
    %23 = sbr.rel (0) target = $region25
  $region24: #{tpu_custom_call.1} parent=0 // pred_region
    _
  $region25: #{tpu_custom_call.1} parent=0 // pred_fallthru
    _
  // Predicated region
  $region26: #{tpu_custom_call.1} parent=0 // pred_check
    _
  $region27: #{tpu_custom_call.1} parent=0 // pred_check_branch
    %25 = sbr.rel (0) target = $region29
  $region28: #{tpu_custom_call.1} parent=0 // pred_region
    _
  $region29: #{tpu_custom_call.1} parent=0 // pred_fallthru
    _
  %v26 = vld [vmem:[%s0] sm:$0xff]
  %v27 = vld [vmem:[%s0 + $0x8] sm:$0xff]
  %v28 = vld [vmem:[%s0 + $0x10] sm:$0xff]
  %v29 = vld [vmem:[%s0 + $0x18] sm:$0xff]
  %v30 = vld [vmem:[%s0 + $0x20] sm:$0xff]
  %v31 = vld [vmem:[%s0 + $0x28] sm:$0xff]
  %v32 = vld [vmem:[%s0 + $0x30] sm:$0xff]
  %v33 = vld [vmem:[%s0 + $0x38] sm:$0xff]
  %v34 = vld [vmem:[%s0 + $0x40] sm:$0xff]
  %v35 = vld [vmem:[%s0 + $0x48] sm:$0xff]
  %v36 = vld [vmem:[%s0 + $0x50] sm:$0xff]
  %v37 = vld [vmem:[%s0 + $0x58] sm:$0xff]
  %v38 = vld [vmem:[%s0 + $0x60] sm:$0xff]
  %v39 = vld [vmem:[%s0 + $0x68] sm:$0xff]
  %v40 = vld [vmem:[%s0 + $0x70] sm:$0xff]
  %v41 = vld [vmem:[%s0 + $0x78] sm:$0xff]
  %v42 = vld [vmem:[%s0 + $0x80] sm:$0xff]
  %v43 = vld [vmem:[%s0 + $0x88] sm:$0xff]
  %v44 = vld [vmem:[%s0 + $0x90] sm:$0xff]
  %v45 = vld [vmem:[%s0 + $0x98] sm:$0xff]
  %v46 = vld [vmem:[%s0 + $0xa0] sm:$0xff]
  %v47 = vld [vmem:[%s0 + $0xa8] sm:$0xff]
  %v48 = vld [vmem:[%s0 + $0xb0] sm:$0xff]
  %v49 = vld [vmem:[%s0 + $0xb8] sm:$0xff]
  %v50 = vld [vmem:[%s0 + $0xc0] sm:$0xff]
  %v51 = vld [vmem:[%s0 + $0xc8] sm:$0xff]
  %v52 = vld [vmem:[%s0 + $0xd0] sm:$0xff]
  %v53 = vld [vmem:[%s0 + $0xd8] sm:$0xff]
  %v54 = vld [vmem:[%s0 + $0xe0] sm:$0xff]
  %v55 = vld [vmem:[%s0 + $0xe8] sm:$0xff]
  %v56 = vld [vmem:[%s0 + $0xf0] sm:$0xff]
  %v57 = vld [vmem:[%s0 + $0xf8] sm:$0xff]
  %v58 = vld [vmem:[%s1] sm:$0x7]
  %v59 = vld [vmem:[%s2] sm:$0x1]
  %v61 = vlaneseq
  %v62 = vshrl.u32 %v61, 7
  %v63 = vsub.s32 0, %v62
  %v64 = vrot.slane %v59, %v63
  %vm66 = vcmask 23552
  %v68 = vsel %vm66, %v26, 0
  %v71 = vsel %vm66, %v27, 0
  %v74 = vsel %vm66, %v28, 0
  %v77 = vsel %vm66, %v29, 0
  %v80 = vsel %vm66, %v30, 0
  %v83 = vsel %vm66, %v31, 0
  %v86 = vsel %vm66, %v32, 0
  %v89 = vsel %vm66, %v33, 0
  %v92 = vsel %vm66, %v34, 0
  %v95 = vsel %vm66, %v35, 0
  %v98 = vsel %vm66, %v36, 0
  %v101 = vsel %vm66, %v37, 0
  %v104 = vsel %vm66, %v38, 0
  %v107 = vsel %vm66, %v39, 0
  %v110 = vsel %vm66, %v40, 0
  %v113 = vsel %vm66, %v41, 0
  %v116 = vsel %vm66, %v42, 0
  %v119 = vsel %vm66, %v43, 0
  %v122 = vsel %vm66, %v44, 0
  %v125 = vsel %vm66, %v45, 0
  %v128 = vsel %vm66, %v46, 0
  %v131 = vsel %vm66, %v47, 0
  %v134 = vsel %vm66, %v48, 0
  %v137 = vsel %vm66, %v49, 0
  %v140 = vsel %vm66, %v50, 0
  %v143 = vsel %vm66, %v51, 0
  %v146 = vsel %vm66, %v52, 0
  %v149 = vsel %vm66, %v53, 0
  %v152 = vsel %vm66, %v54, 0
  %v155 = vsel %vm66, %v55, 0
  %v158 = vsel %vm66, %v56, 0
  %v161 = vsel %vm66, %v57, 0
  %vm163 = vcmask 1042432
  %v165 = vsel %vm163, %v58, 0
  %167 = vmatprep.subr.mxu0 0.0
  %168 = vmatpush1.msra.mxu0 %v165
  %169 = vmatprep.subr.mxu0 0.0
  %170 = vmatpush1.msra.mxu0 0.0
  %171 = vmatprep.subr.mxu0 0.0
  %172 = vmatpush1.msra.mxu0 0.0
  %173 = vmatprep.subr.mxu0 0.0
  %174 = vmatpush1.msra.mxu0 0.0
  %175 = vmatprep.subr.mxu0 0.0
  %176 = vmatpush1.msra.mxu0 0.0
  %177 = vmatprep.subr.mxu0 0.0
  %178 = vmatpush1.msra.mxu0 0.0
  %179 = vmatprep.subr.mxu0 0.0
  %180 = vmatpush1.msra.mxu0 0.0
  %181 = vmatprep.subr.mxu0 0.0
  %182 = vmatpush1.msra.mxu0 0.0
  %183 = vmatprep.subr.mxu0 0.0
  %184 = vmatpush1.msra.mxu0 0.0
  %185 = vmatprep.subr.mxu0 0.0
  %186 = vmatpush1.msra.mxu0 0.0
  %187 = vmatprep.subr.mxu0 0.0
  %188 = vmatpush1.msra.mxu0 0.0
  %189 = vmatprep.subr.mxu0 0.0
  %190 = vmatpush1.msra.mxu0 0.0
  %191 = vmatprep.subr.mxu0 0.0
  %192 = vmatpush1.msra.mxu0 0.0
  %193 = vmatprep.subr.mxu0 0.0
  %194 = vmatpush1.msra.mxu0 0.0
  %195 = vmatprep.subr.mxu0 0.0
  %196 = vmatpush1.msra.mxu0 0.0
  %197 = vmatprep.subr.mxu0 0.0
  %198 = vmatpush1.msra.mxu0 0.0
  %199 = vmatprep.subr.mxu0 0.0
  %200 = vmatpush1.msra.mxu0 0.0
  %201 = vmatprep.subr.mxu0 0.0
  %202 = vmatpush1.msra.mxu0 0.0
  %203 = vmatprep.subr.mxu0 0.0
  %204 = vmatpush1.msra.mxu0 0.0
  %205 = vmatprep.subr.mxu0 0.0
  %206 = vmatpush1.msra.mxu0 0.0
  %207 = vmatprep.subr.mxu0 0.0
  %208 = vmatpush1.msra.mxu0 0.0
  %209 = vmatprep.subr.mxu0 0.0
  %210 = vmatpush1.msra.mxu0 0.0
  %211 = vmatprep.subr.mxu0 0.0
  %212 = vmatpush1.msra.mxu0 0.0
  %213 = vmatprep.subr.mxu0 0.0
  %214 = vmatpush1.msra.mxu0 0.0
  %215 = vmatprep.subr.mxu0 0.0
  %216 = vmatpush1.msra.mxu0 0.0
  %217 = vmatprep.subr.mxu0 0.0
  %218 = vmatpush1.msra.mxu0 0.0
  %219 = vmatprep.subr.mxu0 0.0
  %220 = vmatpush1.msra.mxu0 0.0
  %221 = vmatprep.subr.mxu0 0.0
  %222 = vmatpush1.msra.mxu0 0.0
  %223 = vmatprep.subr.mxu0 0.0
  %224 = vmatpush1.msra.mxu0 0.0
  %225 = vmatprep.subr.mxu0 0.0
  %226 = vmatpush1.msra.mxu0 0.0
  %227 = vmatprep.subr.mxu0 0.0
  %228 = vmatpush1.msra.mxu0 0.0
  %229 = vmatprep.subr.mxu0 0.0
  %230 = vmatpush1.msra.mxu0 0.0
  %231 = vmatprep.mubr.f32.mxu0 0.0
  %232 = vmatmul.mubr.f32.gmra.mrb[0].mxu0 %v68
  %v233 = vpop.f32.mrb[0].mxu0
  %v234 = vadd.f32 %v64, %v233
  %v235 = vpop.f32.mrb[0].mxu0
  %236 = vmatprep.mubr.f32.mxu0 0.0
  %237 = vmatmul.mubr.f32.gmra.mrb[0].mxu0 %v71
  %v238 = vpop.f32.mrb[0].mxu0
  %v239 = vadd.f32 %v64, %v238
  %v240 = vpop.f32.mrb[0].mxu0
  %241 = vmatprep.mubr.f32.mxu0 0.0
  %242 = vmatmul.mubr.f32.gmra.mrb[0].mxu0 %v74
  %v243 = vpop.f32.mrb[0].mxu0
  %v244 = vadd.f32 %v64, %v243
  %v245 = vpop.f32.mrb[0].mxu0
  %246 = vmatprep.mubr.f32.mxu0 0.0
  %247 = vmatmul.mubr.f32.gmra.mrb[0].mxu0 %v77
  %v248 = vpop.f32.mrb[0].mxu0
  %v249 = vadd.f32 %v64, %v248
  %v250 = vpop.f32.mrb[0].mxu0
  %251 = vmatprep.mubr.f32.mxu0 0.0
  %252 = vmatmul.mubr.f32.gmra.mrb[0].mxu0 %v80
  %v253 = vpop.f32.mrb[0].mxu0
  %v254 = vadd.f32 %v64, %v253
  %v255 = vpop.f32.mrb[0].mxu0
  %256 = vmatprep.mubr.f32.mxu0 0.0
  %257 = vmatmul.mubr.f32.gmra.mrb[0].mxu0 %v83
  %v258 = vpop.f32.mrb[0].mxu0
  %v259 = vadd.f32 %v64, %v258
  %v260 = vpop.f32.mrb[0].mxu0
  %261 = vmatprep.mubr.f32.mxu0 0.0
  %262 = vmatmul.mubr.f32.gmra.mrb[0].mxu0 %v86
  %v263 = vpop.f32.mrb[0].mxu0
  %v264 = vadd.f32 %v64, %v263
  %v265 = vpop.f32.mrb[0].mxu0
  %266 = vmatprep.mubr.f32.mxu0 0.0
  %267 = vmatmul.mubr.f32.gmra.mrb[0].mxu0 %v89
  %v268 = vpop.f32.mrb[0].mxu0
  %v269 = vadd.f32 %v64, %v268
  %v270 = vpop.f32.mrb[0].mxu0
  %271 = vmatprep.mubr.f32.mxu0 0.0
  %272 = vmatmul.mubr.f32.gmra.mrb[0].mxu0 %v92
  %v273 = vpop.f32.mrb[0].mxu0
  %v274 = vadd.f32 %v64, %v273
  %v275 = vpop.f32.mrb[0].mxu0
  %276 = vmatprep.mubr.f32.mxu0 0.0
  %277 = vmatmul.mubr.f32.gmra.mrb[0].mxu0 %v95
  %v278 = vpop.f32.mrb[0].mxu0
  %v279 = vadd.f32 %v64, %v278
  %v280 = vpop.f32.mrb[0].mxu0
  %281 = vmatprep.mubr.f32.mxu0 0.0
  %282 = vmatmul.mubr.f32.gmra.mrb[0].mxu0 %v98
  %v283 = vpop.f32.mrb[0].mxu0
  %v284 = vadd.f32 %v64, %v283
  %v285 = vpop.f32.mrb[0].mxu0
  %286 = vmatprep.mubr.f32.mxu0 0.0
  %287 = vmatmul.mubr.f32.gmra.mrb[0].mxu0 %v101
  %v288 = vpop.f32.mrb[0].mxu0
  %v289 = vadd.f32 %v64, %v288
  %v290 = vpop.f32.mrb[0].mxu0
  %291 = vmatprep.mubr.f32.mxu0 0.0
  %292 = vmatmul.mubr.f32.gmra.mrb[0].mxu0 %v104
  %v293 = vpop.f32.mrb[0].mxu0
  %v294 = vadd.f32 %v64, %v293
  %v295 = vpop.f32.mrb[0].mxu0
  %296 = vmatprep.mubr.f32.mxu0 0.0
  %297 = vmatmul.mubr.f32.gmra.mrb[0].mxu0 %v107
  %v298 = vpop.f32.mrb[0].mxu0
  %v299 = vadd.f32 %v64, %v298
  %v300 = vpop.f32.mrb[0].mxu0
  %301 = vmatprep.mubr.f32.mxu0 0.0
  %302 = vmatmul.mubr.f32.gmra.mrb[0].mxu0 %v110
  %v303 = vpop.f32.mrb[0].mxu0
  %v304 = vadd.f32 %v64, %v303
  %v305 = vpop.f32.mrb[0].mxu0
  %306 = vmatprep.mubr.f32.mxu0 0.0
  %307 = vmatmul.mubr.f32.gmra.mrb[0].mxu0 %v113
  %v308 = vpop.f32.mrb[0].mxu0
  %v309 = vadd.f32 %v64, %v308
  %v310 = vpop.f32.mrb[0].mxu0
  %311 = vmatprep.mubr.f32.mxu0 0.0
  %312 = vmatmul.mubr.f32.gmra.mrb[0].mxu0 %v116
  %v313 = vpop.f32.mrb[0].mxu0
  %v314 = vadd.f32 %v64, %v313
  %v315 = vpop.f32.mrb[0].mxu0
  %316 = vmatprep.mubr.f32.mxu0 0.0
  %317 = vmatmul.mubr.f32.gmra.mrb[0].mxu0 %v119
  %v318 = vpop.f32.mrb[0].mxu0
  %v319 = vadd.f32 %v64, %v318
  %v320 = vpop.f32.mrb[0].mxu0
  %321 = vmatprep.mubr.f32.mxu0 0.0
  %322 = vmatmul.mubr.f32.gmra.mrb[0].mxu0 %v122
  %v323 = vpop.f32.mrb[0].mxu0
  %v324 = vadd.f32 %v64, %v323
  %v325 = vpop.f32.mrb[0].mxu0
  %326 = vmatprep.mubr.f32.mxu0 0.0
  %327 = vmatmul.mubr.f32.gmra.mrb[0].mxu0 %v125
  %v328 = vpop.f32.mrb[0].mxu0
  %v329 = vadd.f32 %v64, %v328
  %v330 = vpop.f32.mrb[0].mxu0
  %331 = vmatprep.mubr.f32.mxu0 0.0
  %332 = vmatmul.mubr.f32.gmra.mrb[0].mxu0 %v128
  %v333 = vpop.f32.mrb[0].mxu0
  %v334 = vadd.f32 %v64, %v333
  %v335 = vpop.f32.mrb[0].mxu0
  %336 = vmatprep.mubr.f32.mxu0 0.0
  %337 = vmatmul.mubr.f32.gmra.mrb[0].mxu0 %v131
  %v338 = vpop.f32.mrb[0].mxu0
  %v339 = vadd.f32 %v64, %v338
  %v340 = vpop.f32.mrb[0].mxu0
  %341 = vmatprep.mubr.f32.mxu0 0.0
  %342 = vmatmul.mubr.f32.gmra.mrb[0].mxu0 %v134
  %v343 = vpop.f32.mrb[0].mxu0
  %v344 = vadd.f32 %v64, %v343
  %v345 = vpop.f32.mrb[0].mxu0
  %346 = vmatprep.mubr.f32.mxu0 0.0
  %347 = vmatmul.mubr.f32.gmra.mrb[0].mxu0 %v137
  %v348 = vpop.f32.mrb[0].mxu0
  %v349 = vadd.f32 %v64, %v348
  %v350 = vpop.f32.mrb[0].mxu0
  %351 = vmatprep.mubr.f32.mxu0 0.0
  %352 = vmatmul.mubr.f32.gmra.mrb[0].mxu0 %v140
  %v353 = vpop.f32.mrb[0].mxu0
  %v354 = vadd.f32 %v64, %v353
  %v355 = vpop.f32.mrb[0].mxu0
  %356 = vmatprep.mubr.f32.mxu0 0.0
  %357 = vmatmul.mubr.f32.gmra.mrb[0].mxu0 %v143
  %v358 = vpop.f32.mrb[0].mxu0
  %v359 = vadd.f32 %v64, %v358
  %v360 = vpop.f32.mrb[0].mxu0
  %361 = vmatprep.mubr.f32.mxu0 0.0
  %362 = vmatmul.mubr.f32.gmra.mrb[0].mxu0 %v146
  %v363 = vpop.f32.mrb[0].mxu0
  %v364 = vadd.f32 %v64, %v363
  %v365 = vpop.f32.mrb[0].mxu0
  %366 = vmatprep.mubr.f32.mxu0 0.0
  %367 = vmatmul.mubr.f32.gmra.mrb[0].mxu0 %v149
  %v368 = vpop.f32.mrb[0].mxu0
  %v369 = vadd.f32 %v64, %v368
  %v370 = vpop.f32.mrb[0].mxu0
  %371 = vmatprep.mubr.f32.mxu0 0.0
  %372 = vmatmul.mubr.f32.gmra.mrb[0].mxu0 %v152
  %v373 = vpop.f32.mrb[0].mxu0
  %v374 = vadd.f32 %v64, %v373
  %v375 = vpop.f32.mrb[0].mxu0
  %376 = vmatprep.mubr.f32.mxu0 0.0
  %377 = vmatmul.mubr.f32.gmra.mrb[0].mxu0 %v155
  %v378 = vpop.f32.mrb[0].mxu0
  %v379 = vadd.f32 %v64, %v378
  %v380 = vpop.f32.mrb[0].mxu0
  %381 = vmatprep.mubr.f32.mxu0 0.0
  %382 = vmatmul.mubr.f32.gmra.mrb[0].mxu0 %v158
  %v383 = vpop.f32.mrb[0].mxu0
  %v384 = vadd.f32 %v64, %v383
  %v385 = vpop.f32.mrb[0].mxu0
  %386 = vmatprep.mubr.f32.mxu0 0.0
  %387 = vmatmul.mubr.f32.gmra.mrb[0].mxu0 %v161
  %v388 = vpop.f32.mrb[0].mxu0
  %v389 = vadd.f32 %v64, %v388
  %v390 = vpop.f32.mrb[0].mxu0
  %391 = vdwg.mxu0
  %v392 = vtanh.pop %v234
  %v393 = vtanh.pop %v239
  %v394 = vtanh.pop %v244
  %v395 = vtanh.pop %v249
  %v396 = vtanh.pop %v254
  %v397 = vtanh.pop %v259
  %v398 = vtanh.pop %v264
  %v399 = vtanh.pop %v269
  %v400 = vtanh.pop %v274
  %v401 = vtanh.pop %v279
  %v402 = vtanh.pop %v284
  %v403 = vtanh.pop %v289
  %v404 = vtanh.pop %v294
  %v405 = vtanh.pop %v299
  %v406 = vtanh.pop %v304
  %v407 = vtanh.pop %v309
  %v408 = vtanh.pop %v314
  %v409 = vtanh.pop %v319
  %v410 = vtanh.pop %v324
  %v411 = vtanh.pop %v329
  %v412 = vtanh.pop %v334
  %v413 = vtanh.pop %v339
  %v414 = vtanh.pop %v344
  %v415 = vtanh.pop %v349
  %v416 = vtanh.pop %v354
  %v417 = vtanh.pop %v359
  %v418 = vtanh.pop %v364
  %v419 = vtanh.pop %v369
  %v420 = vtanh.pop %v374
  %v421 = vtanh.pop %v379
  %v422 = vtanh.pop %v384
  %v423 = vtanh.pop %v389
  %v424 = vld [vmem:[%s3] sm:$0xff]
  %v425 = vld [vmem:[%s3 + $0x8] sm:$0xff]
  %v426 = vld [vmem:[%s3 + $0x10] sm:$0xff]
  %v427 = vld [vmem:[%s3 + $0x18] sm:$0xff]
  %v428 = vld [vmem:[%s4] sm:$0x1]
  %v430 = vlaneseq
  %v431 = vshrl.u32 %v430, 7
  %v432 = vsub.s32 0, %v431
  %v433 = vrot.slane %v428, %v432
  %vm435 = vcmask 261120
  %v437 = vsel %vm435, %v392, 0
  %v440 = vsel %vm435, %v393, 0
  %v443 = vsel %vm435, %v394, 0
  %v446 = vsel %vm435, %v395, 0
  %v449 = vsel %vm435, %v396, 0
  %v452 = vsel %vm435, %v397, 0
  %v455 = vsel %vm435, %v398, 0
  %v458 = vsel %vm435, %v399, 0
  %v461 = vsel %vm435, %v400, 0
  %v464 = vsel %vm435, %v401, 0
  %v467 = vsel %vm435, %v402, 0
  %v470 = vsel %vm435, %v403, 0
  %v473 = vsel %vm435, %v404, 0
  %v476 = vsel %vm435, %v405, 0
  %v479 = vsel %vm435, %v406, 0
  %v482 = vsel %vm435, %v407, 0
  %v485 = vsel %vm435, %v408, 0
  %v488 = vsel %vm435, %v409, 0
  %v491 = vsel %vm435, %v410, 0
  %v494 = vsel %vm435, %v411, 0
  %v497 = vsel %vm435, %v412, 0
  %v500 = vsel %vm435, %v413, 0
  %v503 = vsel %vm435, %v414, 0
  %v506 = vsel %vm435, %v415, 0
  %v509 = vsel %vm435, %v416, 0
  %v512 = vsel %vm435, %v417, 0
  %v515 = vsel %vm435, %v418, 0
  %v518 = vsel %vm435, %v419, 0
  %v521 = vsel %vm435, %v420, 0
  %v524 = vsel %vm435, %v421, 0
  %v527 = vsel %vm435, %v422, 0
  %v530 = vsel %vm435, %v423, 0
  %532 = vmatprep.subr.mxu0 0.0
  %533 = vmatpush1.msra.mxu0 %v424
  %534 = vmatprep.subr.mxu0 0.0
  %535 = vmatpush1.msra.mxu0 %v425
  %536 = vmatprep.subr.mxu0 0.0
  %537 = vmatpush1.msra.mxu0 %v426
  %538 = vmatprep.subr.mxu0 0.0
  %539 = vmatpush1.msra.mxu0 %v427
  %540 = vmatprep.subr.mxu0 0.0
  %541 = vmatpush1.msra.mxu0 0.0
  %542 = vmatprep.subr.mxu0 0.0
  %543 = vmatpush1.msra.mxu0 0.0
  %544 = vmatprep.subr.mxu0 0.0
  %545 = vmatpush1.msra.mxu0 0.0
  %546 = vmatprep.subr.mxu0 0.0
  %547 = vmatpush1.msra.mxu0 0.0
  %548 = vmatprep.subr.mxu0 0.0
  %549 = vmatpush1.msra.mxu0 0.0
  %550 = vmatprep.subr.mxu0 0.0
  %551 = vmatpush1.msra.mxu0 0.0
  %552 = vmatprep.subr.mxu0 0.0
  %553 = vmatpush1.msra.mxu0 0.0
  %554 = vmatprep.subr.mxu0 0.0
  %555 = vmatpush1.msra.mxu0 0.0
  %556 = vmatprep.subr.mxu0 0.0
  %557 = vmatpush1.msra.mxu0 0.0
  %558 = vmatprep.subr.mxu0 0.0
  %559 = vmatpush1.msra.mxu0 0.0
  %560 = vmatprep.subr.mxu0 0.0
  %561 = vmatpush1.msra.mxu0 0.0
  %562 = vmatprep.subr.mxu0 0.0
  %563 = vmatpush1.msra.mxu0 0.0
  %564 = vmatprep.subr.mxu0 0.0
  %565 = vmatpush1.msra.mxu0 0.0
  %566 = vmatprep.subr.mxu0 0.0
  %567 = vmatpush1.msra.mxu0 0.0
  %568 = vmatprep.subr.mxu0 0.0
  %569 = vmatpush1.msra.mxu0 0.0
  %570 = vmatprep.subr.mxu0 0.0
  %571 = vmatpush1.msra.mxu0 0.0
  %572 = vmatprep.subr.mxu0 0.0
  %573 = vmatpush1.msra.mxu0 0.0
  %574 = vmatprep.subr.mxu0 0.0
  %575 = vmatpush1.msra.mxu0 0.0
  %576 = vmatprep.subr.mxu0 0.0
  %577 = vmatpush1.msra.mxu0 0.0
  %578 = vmatprep.subr.mxu0 0.0
  %579 = vmatpush1.msra.mxu0 0.0
  %580 = vmatprep.subr.mxu0 0.0
  %581 = vmatpush1.msra.mxu0 0.0
  %582 = vmatprep.subr.mxu0 0.0
  %583 = vmatpush1.msra.mxu0 0.0
  %584 = vmatprep.subr.mxu0 0.0
  %585 = vmatpush1.msra.mxu0 0.0
  %586 = vmatprep.subr.mxu0 0.0
  %587 = vmatpush1.msra.mxu0 0.0
  %588 = vmatprep.subr.mxu0 0.0
  %589 = vmatpush1.msra.mxu0 0.0
  %590 = vmatprep.subr.mxu0 0.0
  %591 = vmatpush1.msra.mxu0 0.0
  %592 = vmatprep.subr.mxu0 0.0
  %593 = vmatpush1.msra.mxu0 0.0
  %594 = vmatprep.subr.mxu0 0.0
  %595 = vmatpush1.msra.mxu0 0.0
  %596 = vmatprep.mubr.f32.mxu0 0.0
  %597 = vmatmul.mubr.f32.gmra.mrb[0].mxu0 %v437
  %v598 = vpop.f32.mrb[0].mxu0
  %v599 = vadd.f32 %v433, %v598
  %v600 = vpop.f32.mrb[0].mxu0
  %601 = vmatprep.mubr.f32.mxu0 0.0
  %602 = vmatmul.mubr.f32.gmra.mrb[0].mxu0 %v440
  %v603 = vpop.f32.mrb[0].mxu0
  %v604 = vadd.f32 %v433, %v603
  %v605 = vpop.f32.mrb[0].mxu0
  %606 = vmatprep.mubr.f32.mxu0 0.0
  %607 = vmatmul.mubr.f32.gmra.mrb[0].mxu0 %v443
  %v608 = vpop.f32.mrb[0].mxu0
  %v609 = vadd.f32 %v433, %v608
  %v610 = vpop.f32.mrb[0].mxu0
  %611 = vmatprep.mubr.f32.mxu0 0.0
  %612 = vmatmul.mubr.f32.gmra.mrb[0].mxu0 %v446
  %v613 = vpop.f32.mrb[0].mxu0
  %v614 = vadd.f32 %v433, %v613
  %v615 = vpop.f32.mrb[0].mxu0
  %616 = vmatprep.mubr.f32.mxu0 0.0
  %617 = vmatmul.mubr.f32.gmra.mrb[0].mxu0 %v449
  %v618 = vpop.f32.mrb[0].mxu0
  %v619 = vadd.f32 %v433, %v618
  %v620 = vpop.f32.mrb[0].mxu0
  %621 = vmatprep.mubr.f32.mxu0 0.0
  %622 = vmatmul.mubr.f32.gmra.mrb[0].mxu0 %v452
  %v623 = vpop.f32.mrb[0].mxu0
  %v624 = vadd.f32 %v433, %v623
  %v625 = vpop.f32.mrb[0].mxu0
  %626 = vmatprep.mubr.f32.mxu0 0.0
  %627 = vmatmul.mubr.f32.gmra.mrb[0].mxu0 %v455
  %v628 = vpop.f32.mrb[0].mxu0
  %v629 = vadd.f32 %v433, %v628
  %v630 = vpop.f32.mrb[0].mxu0
  %631 = vmatprep.mubr.f32.mxu0 0.0
  %632 = vmatmul.mubr.f32.gmra.mrb[0].mxu0 %v458
  %v633 = vpop.f32.mrb[0].mxu0
  %v634 = vadd.f32 %v433, %v633
  %v635 = vpop.f32.mrb[0].mxu0
  %636 = vmatprep.mubr.f32.mxu0 0.0
  %637 = vmatmul.mubr.f32.gmra.mrb[0].mxu0 %v461
  %v638 = vpop.f32.mrb[0].mxu0
  %v639 = vadd.f32 %v433, %v638
  %v640 = vpop.f32.mrb[0].mxu0
  %641 = vmatprep.mubr.f32.mxu0 0.0
  %642 = vmatmul.mubr.f32.gmra.mrb[0].mxu0 %v464
  %v643 = vpop.f32.mrb[0].mxu0
  %v644 = vadd.f32 %v433, %v643
  %v645 = vpop.f32.mrb[0].mxu0
  %646 = vmatprep.mubr.f32.mxu0 0.0
  %647 = vmatmul.mubr.f32.gmra.mrb[0].mxu0 %v467
  %v648 = vpop.f32.mrb[0].mxu0
  %v649 = vadd.f32 %v433, %v648
  %v650 = vpop.f32.mrb[0].mxu0
  %651 = vmatprep.mubr.f32.mxu0 0.0
  %652 = vmatmul.mubr.f32.gmra.mrb[0].mxu0 %v470
  %v653 = vpop.f32.mrb[0].mxu0
  %v654 = vadd.f32 %v433, %v653
  %v655 = vpop.f32.mrb[0].mxu0
  %656 = vmatprep.mubr.f32.mxu0 0.0
  %657 = vmatmul.mubr.f32.gmra.mrb[0].mxu0 %v473
  %v658 = vpop.f32.mrb[0].mxu0
  %v659 = vadd.f32 %v433, %v658
  %v660 = vpop.f32.mrb[0].mxu0
  %661 = vmatprep.mubr.f32.mxu0 0.0
  %662 = vmatmul.mubr.f32.gmra.mrb[0].mxu0 %v476
  %v663 = vpop.f32.mrb[0].mxu0
  %v664 = vadd.f32 %v433, %v663
  %v665 = vpop.f32.mrb[0].mxu0
  %666 = vmatprep.mubr.f32.mxu0 0.0
  %667 = vmatmul.mubr.f32.gmra.mrb[0].mxu0 %v479
  %v668 = vpop.f32.mrb[0].mxu0
  %v669 = vadd.f32 %v433, %v668
  %v670 = vpop.f32.mrb[0].mxu0
  %671 = vmatprep.mubr.f32.mxu0 0.0
  %672 = vmatmul.mubr.f32.gmra.mrb[0].mxu0 %v482
  %v673 = vpop.f32.mrb[0].mxu0
  %v674 = vadd.f32 %v433, %v673
  %v675 = vpop.f32.mrb[0].mxu0
  %676 = vmatprep.mubr.f32.mxu0 0.0
  %677 = vmatmul.mubr.f32.gmra.mrb[0].mxu0 %v485
  %v678 = vpop.f32.mrb[0].mxu0
  %v679 = vadd.f32 %v433, %v678
  %v680 = vpop.f32.mrb[0].mxu0
  %681 = vmatprep.mubr.f32.mxu0 0.0
  %682 = vmatmul.mubr.f32.gmra.mrb[0].mxu0 %v488
  %v683 = vpop.f32.mrb[0].mxu0
  %v684 = vadd.f32 %v433, %v683
  %v685 = vpop.f32.mrb[0].mxu0
  %686 = vmatprep.mubr.f32.mxu0 0.0
  %687 = vmatmul.mubr.f32.gmra.mrb[0].mxu0 %v491
  %v688 = vpop.f32.mrb[0].mxu0
  %v689 = vadd.f32 %v433, %v688
  %v690 = vpop.f32.mrb[0].mxu0
  %691 = vmatprep.mubr.f32.mxu0 0.0
  %692 = vmatmul.mubr.f32.gmra.mrb[0].mxu0 %v494
  %v693 = vpop.f32.mrb[0].mxu0
  %v694 = vadd.f32 %v433, %v693
  %v695 = vpop.f32.mrb[0].mxu0
  %696 = vmatprep.mubr.f32.mxu0 0.0
  %697 = vmatmul.mubr.f32.gmra.mrb[0].mxu0 %v497
  %v698 = vpop.f32.mrb[0].mxu0
  %v699 = vadd.f32 %v433, %v698
  %v700 = vpop.f32.mrb[0].mxu0
  %701 = vmatprep.mubr.f32.mxu0 0.0
  %702 = vmatmul.mubr.f32.gmra.mrb[0].mxu0 %v500
  %v703 = vpop.f32.mrb[0].mxu0
  %v704 = vadd.f32 %v433, %v703
  %v705 = vpop.f32.mrb[0].mxu0
  %706 = vmatprep.mubr.f32.mxu0 0.0
  %707 = vmatmul.mubr.f32.gmra.mrb[0].mxu0 %v503
  %v708 = vpop.f32.mrb[0].mxu0
  %v709 = vadd.f32 %v433, %v708
  %v710 = vpop.f32.mrb[0].mxu0
  %711 = vmatprep.mubr.f32.mxu0 0.0
  %712 = vmatmul.mubr.f32.gmra.mrb[0].mxu0 %v506
  %v713 = vpop.f32.mrb[0].mxu0
  %v714 = vadd.f32 %v433, %v713
  %v715 = vpop.f32.mrb[0].mxu0
  %716 = vmatprep.mubr.f32.mxu0 0.0
  %717 = vmatmul.mubr.f32.gmra.mrb[0].mxu0 %v509
  %v718 = vpop.f32.mrb[0].mxu0
  %v719 = vadd.f32 %v433, %v718
  %v720 = vpop.f32.mrb[0].mxu0
  %721 = vmatprep.mubr.f32.mxu0 0.0
  %722 = vmatmul.mubr.f32.gmra.mrb[0].mxu0 %v512
  %v723 = vpop.f32.mrb[0].mxu0
  %v724 = vadd.f32 %v433, %v723
  %v725 = vpop.f32.mrb[0].mxu0
  %726 = vmatprep.mubr.f32.mxu0 0.0
  %727 = vmatmul.mubr.f32.gmra.mrb[0].mxu0 %v515
  %v728 = vpop.f32.mrb[0].mxu0
  %v729 = vadd.f32 %v433, %v728
  %v730 = vpop.f32.mrb[0].mxu0
  %731 = vmatprep.mubr.f32.mxu0 0.0
  %732 = vmatmul.mubr.f32.gmra.mrb[0].mxu0 %v518
  %v733 = vpop.f32.mrb[0].mxu0
  %v734 = vadd.f32 %v433, %v733
  %v735 = vpop.f32.mrb[0].mxu0
  %736 = vmatprep.mubr.f32.mxu0 0.0
  %737 = vmatmul.mubr.f32.gmra.mrb[0].mxu0 %v521
  %v738 = vpop.f32.mrb[0].mxu0
  %v739 = vadd.f32 %v433, %v738
  %v740 = vpop.f32.mrb[0].mxu0
  %741 = vmatprep.mubr.f32.mxu0 0.0
  %742 = vmatmul.mubr.f32.gmra.mrb[0].mxu0 %v524
  %v743 = vpop.f32.mrb[0].mxu0
  %v744 = vadd.f32 %v433, %v743
  %v745 = vpop.f32.mrb[0].mxu0
  %746 = vmatprep.mubr.f32.mxu0 0.0
  %747 = vmatmul.mubr.f32.gmra.mrb[0].mxu0 %v527
  %v748 = vpop.f32.mrb[0].mxu0
  %v749 = vadd.f32 %v433, %v748
  %v750 = vpop.f32.mrb[0].mxu0
  %751 = vmatprep.mubr.f32.mxu0 0.0
  %752 = vmatmul.mubr.f32.gmra.mrb[0].mxu0 %v530
  %v753 = vpop.f32.mrb[0].mxu0
  %v754 = vadd.f32 %v433, %v753
  %v755 = vpop.f32.mrb[0].mxu0
  %756 = vdwg.mxu0
  %v757 = vtanh.pop %v599
  %v758 = vtanh.pop %v604
  %v759 = vtanh.pop %v609
  %v760 = vtanh.pop %v614
  %v761 = vtanh.pop %v619
  %v762 = vtanh.pop %v624
  %v763 = vtanh.pop %v629
  %v764 = vtanh.pop %v634
  %v765 = vtanh.pop %v639
  %v766 = vtanh.pop %v644
  %v767 = vtanh.pop %v649
  %v768 = vtanh.pop %v654
  %v769 = vtanh.pop %v659
  %v770 = vtanh.pop %v664
  %v771 = vtanh.pop %v669
  %v772 = vtanh.pop %v674
  %v773 = vtanh.pop %v679
  %v774 = vtanh.pop %v684
  %v775 = vtanh.pop %v689
  %v776 = vtanh.pop %v694
  %v777 = vtanh.pop %v699
  %v778 = vtanh.pop %v704
  %v779 = vtanh.pop %v709
  %v780 = vtanh.pop %v714
  %v781 = vtanh.pop %v719
  %v782 = vtanh.pop %v724
  %v783 = vtanh.pop %v729
  %v784 = vtanh.pop %v734
  %v785 = vtanh.pop %v739
  %v786 = vtanh.pop %v744
  %v787 = vtanh.pop %v749
  %v788 = vtanh.pop %v754
  %v789 = vld [vmem:[%s5] sm:$0xff]
  %v790 = vld [vmem:[%s5 + $0x8] sm:$0xff]
  %v791 = vld [vmem:[%s5 + $0x10] sm:$0xff]
  %v792 = vld [vmem:[%s5 + $0x18] sm:$0xff]
  %v793 = vld [vmem:[%s6] sm:$0x1]
  %v795 = vlaneseq
  %v796 = vshrl.u32 %v795, 7
  %v797 = vsub.s32 0, %v796
  %v798 = vrot.slane %v793, %v797
  %v801 = vsel %vm435, %v757, 0
  %v804 = vsel %vm435, %v758, 0
  %v807 = vsel %vm435, %v759, 0
  %v810 = vsel %vm435, %v760, 0
  %v813 = vsel %vm435, %v761, 0
  %v816 = vsel %vm435, %v762, 0
  %v819 = vsel %vm435, %v763, 0
  %v822 = vsel %vm435, %v764, 0
  %v825 = vsel %vm435, %v765, 0
  %v828 = vsel %vm435, %v766, 0
  %v831 = vsel %vm435, %v767, 0
  %v834 = vsel %vm435, %v768, 0
  %v837 = vsel %vm435, %v769, 0
  %v840 = vsel %vm435, %v770, 0
  %v843 = vsel %vm435, %v771, 0
  %v846 = vsel %vm435, %v772, 0
  %v849 = vsel %vm435, %v773, 0
  %v852 = vsel %vm435, %v774, 0
  %v855 = vsel %vm435, %v775, 0
  %v858 = vsel %vm435, %v776, 0
  %v861 = vsel %vm435, %v777, 0
  %v864 = vsel %vm435, %v778, 0
  %v867 = vsel %vm435, %v779, 0
  %v870 = vsel %vm435, %v780, 0
  %v873 = vsel %vm435, %v781, 0
  %v876 = vsel %vm435, %v782, 0
  %v879 = vsel %vm435, %v783, 0
  %v882 = vsel %vm435, %v784, 0
  %v885 = vsel %vm435, %v785, 0
  %v888 = vsel %vm435, %v786, 0
  %v891 = vsel %vm435, %v787, 0
  %v894 = vsel %vm435, %v788, 0
  %896 = vmatprep.subr.mxu0 0.0
  %897 = vmatpush1.msra.mxu0 %v789
  %898 = vmatprep.subr.mxu0 0.0
  %899 = vmatpush1.msra.mxu0 %v790
  %900 = vmatprep.subr.mxu0 0.0
  %901 = vmatpush1.msra.mxu0 %v791
  %902 = vmatprep.subr.mxu0 0.0
  %903 = vmatpush1.msra.mxu0 %v792
  %904 = vmatprep.subr.mxu0 0.0
  %905 = vmatpush1.msra.mxu0 0.0
  %906 = vmatprep.subr.mxu0 0.0
  %907 = vmatpush1.msra.mxu0 0.0
  %908 = vmatprep.subr.mxu0 0.0
  %909 = vmatpush1.msra.mxu0 0.0
  %910 = vmatprep.subr.mxu0 0.0
  %911 = vmatpush1.msra.mxu0 0.0
  %912 = vmatprep.subr.mxu0 0.0
  %913 = vmatpush1.msra.mxu0 0.0
  %914 = vmatprep.subr.mxu0 0.0
  %915 = vmatpush1.msra.mxu0 0.0
  %916 = vmatprep.subr.mxu0 0.0
  %917 = vmatpush1.msra.mxu0 0.0
  %918 = vmatprep.subr.mxu0 0.0
  %919 = vmatpush1.msra.mxu0 0.0
  %920 = vmatprep.subr.mxu0 0.0
  %921 = vmatpush1.msra.mxu0 0.0
  %922 = vmatprep.subr.mxu0 0.0
  %923 = vmatpush1.msra.mxu0 0.0
  %924 = vmatprep.subr.mxu0 0.0
  %925 = vmatpush1.msra.mxu0 0.0
  %926 = vmatprep.subr.mxu0 0.0
  %927 = vmatpush1.msra.mxu0 0.0
  %928 = vmatprep.subr.mxu0 0.0
  %929 = vmatpush1.msra.mxu0 0.0
  %930 = vmatprep.subr.mxu0 0.0
  %931 = vmatpush1.msra.mxu0 0.0
  %932 = vmatprep.subr.mxu0 0.0
  %933 = vmatpush1.msra.mxu0 0.0
  %934 = vmatprep.subr.mxu0 0.0
  %935 = vmatpush1.msra.mxu0 0.0
  %936 = vmatprep.subr.mxu0 0.0
  %937 = vmatpush1.msra.mxu0 0.0
  %938 = vmatprep.subr.mxu0 0.0
  %939 = vmatpush1.msra.mxu0 0.0
  %940 = vmatprep.subr.mxu0 0.0
  %941 = vmatpush1.msra.mxu0 0.0
  %942 = vmatprep.subr.mxu0 0.0
  %943 = vmatpush1.msra.mxu0 0.0
  %944 = vmatprep.subr.mxu0 0.0
  %945 = vmatpush1.msra.mxu0 0.0
  %946 = vmatprep.subr.mxu0 0.0
  %947 = vmatpush1.msra.mxu0 0.0
  %948 = vmatprep.subr.mxu0 0.0
  %949 = vmatpush1.msra.mxu0 0.0
  %950 = vmatprep.subr.mxu0 0.0
  %951 = vmatpush1.msra.mxu0 0.0
  %952 = vmatprep.subr.mxu0 0.0
  %953 = vmatpush1.msra.mxu0 0.0
  %954 = vmatprep.subr.mxu0 0.0
  %955 = vmatpush1.msra.mxu0 0.0
  %956 = vmatprep.subr.mxu0 0.0
  %957 = vmatpush1.msra.mxu0 0.0
  %958 = vmatprep.subr.mxu0 0.0
  %959 = vmatpush1.msra.mxu0 0.0
  %960 = vmatprep.mubr.f32.mxu0 0.0
  %961 = vmatmul.mubr.f32.gmra.mrb[0].mxu0 %v801
  %v962 = vpop.f32.mrb[0].mxu0
  %v963 = vadd.f32 %v798, %v962
  %v964 = vpop.f32.mrb[0].mxu0
  %965 = vmatprep.mubr.f32.mxu0 0.0
  %966 = vmatmul.mubr.f32.gmra.mrb[0].mxu0 %v804
  %v967 = vpop.f32.mrb[0].mxu0
  %v968 = vadd.f32 %v798, %v967
  %v969 = vpop.f32.mrb[0].mxu0
  %970 = vmatprep.mubr.f32.mxu0 0.0
  %971 = vmatmul.mubr.f32.gmra.mrb[0].mxu0 %v807
  %v972 = vpop.f32.mrb[0].mxu0
  %v973 = vadd.f32 %v798, %v972
  %v974 = vpop.f32.mrb[0].mxu0
  %975 = vmatprep.mubr.f32.mxu0 0.0
  %976 = vmatmul.mubr.f32.gmra.mrb[0].mxu0 %v810
  %v977 = vpop.f32.mrb[0].mxu0
  %v978 = vadd.f32 %v798, %v977
  %v979 = vpop.f32.mrb[0].mxu0
  %980 = vmatprep.mubr.f32.mxu0 0.0
  %981 = vmatmul.mubr.f32.gmra.mrb[0].mxu0 %v813
  %v982 = vpop.f32.mrb[0].mxu0
  %v983 = vadd.f32 %v798, %v982
  %v984 = vpop.f32.mrb[0].mxu0
  %985 = vmatprep.mubr.f32.mxu0 0.0
  %986 = vmatmul.mubr.f32.gmra.mrb[0].mxu0 %v816
  %v987 = vpop.f32.mrb[0].mxu0
  %v988 = vadd.f32 %v798, %v987
  %v989 = vpop.f32.mrb[0].mxu0
  %990 = vmatprep.mubr.f32.mxu0 0.0
  %991 = vmatmul.mubr.f32.gmra.mrb[0].mxu0 %v819
  %v992 = vpop.f32.mrb[0].mxu0
  %v993 = vadd.f32 %v798, %v992
  %v994 = vpop.f32.mrb[0].mxu0
  %995 = vmatprep.mubr.f32.mxu0 0.0
  %996 = vmatmul.mubr.f32.gmra.mrb[0].mxu0 %v822
  %v997 = vpop.f32.mrb[0].mxu0
  %v998 = vadd.f32 %v798, %v997
  %v999 = vpop.f32.mrb[0].mxu0
  %1000 = vmatprep.mubr.f32.mxu0 0.0
  %1001 = vmatmul.mubr.f32.gmra.mrb[0].mxu0 %v825
  %v1002 = vpop.f32.mrb[0].mxu0
  %v1003 = vadd.f32 %v798, %v1002
  %v1004 = vpop.f32.mrb[0].mxu0
  %1005 = vmatprep.mubr.f32.mxu0 0.0
  %1006 = vmatmul.mubr.f32.gmra.mrb[0].mxu0 %v828
  %v1007 = vpop.f32.mrb[0].mxu0
  %v1008 = vadd.f32 %v798, %v1007
  %v1009 = vpop.f32.mrb[0].mxu0
  %1010 = vmatprep.mubr.f32.mxu0 0.0
  %1011 = vmatmul.mubr.f32.gmra.mrb[0].mxu0 %v831
  %v1012 = vpop.f32.mrb[0].mxu0
  %v1013 = vadd.f32 %v798, %v1012
  %v1014 = vpop.f32.mrb[0].mxu0
  %1015 = vmatprep.mubr.f32.mxu0 0.0
  %1016 = vmatmul.mubr.f32.gmra.mrb[0].mxu0 %v834
  %v1017 = vpop.f32.mrb[0].mxu0
  %v1018 = vadd.f32 %v798, %v1017
  %v1019 = vpop.f32.mrb[0].mxu0
  %1020 = vmatprep.mubr.f32.mxu0 0.0
  %1021 = vmatmul.mubr.f32.gmra.mrb[0].mxu0 %v837
  %v1022 = vpop.f32.mrb[0].mxu0
  %v1023 = vadd.f32 %v798, %v1022
  %v1024 = vpop.f32.mrb[0].mxu0
  %1025 = vmatprep.mubr.f32.mxu0 0.0
  %1026 = vmatmul.mubr.f32.gmra.mrb[0].mxu0 %v840
  %v1027 = vpop.f32.mrb[0].mxu0
  %v1028 = vadd.f32 %v798, %v1027
  %v1029 = vpop.f32.mrb[0].mxu0
  %1030 = vmatprep.mubr.f32.mxu0 0.0
  %1031 = vmatmul.mubr.f32.gmra.mrb[0].mxu0 %v843
  %v1032 = vpop.f32.mrb[0].mxu0
  %v1033 = vadd.f32 %v798, %v1032
  %v1034 = vpop.f32.mrb[0].mxu0
  %1035 = vmatprep.mubr.f32.mxu0 0.0
  %1036 = vmatmul.mubr.f32.gmra.mrb[0].mxu0 %v846
  %v1037 = vpop.f32.mrb[0].mxu0
  %v1038 = vadd.f32 %v798, %v1037
  %v1039 = vpop.f32.mrb[0].mxu0
  %1040 = vmatprep.mubr.f32.mxu0 0.0
  %1041 = vmatmul.mubr.f32.gmra.mrb[0].mxu0 %v849
  %v1042 = vpop.f32.mrb[0].mxu0
  %v1043 = vadd.f32 %v798, %v1042
  %v1044 = vpop.f32.mrb[0].mxu0
  %1045 = vmatprep.mubr.f32.mxu0 0.0
  %1046 = vmatmul.mubr.f32.gmra.mrb[0].mxu0 %v852
  %v1047 = vpop.f32.mrb[0].mxu0
  %v1048 = vadd.f32 %v798, %v1047
  %v1049 = vpop.f32.mrb[0].mxu0
  %1050 = vmatprep.mubr.f32.mxu0 0.0
  %1051 = vmatmul.mubr.f32.gmra.mrb[0].mxu0 %v855
  %v1052 = vpop.f32.mrb[0].mxu0
  %v1053 = vadd.f32 %v798, %v1052
  %v1054 = vpop.f32.mrb[0].mxu0
  %1055 = vmatprep.mubr.f32.mxu0 0.0
  %1056 = vmatmul.mubr.f32.gmra.mrb[0].mxu0 %v858
  %v1057 = vpop.f32.mrb[0].mxu0
  %v1058 = vadd.f32 %v798, %v1057
  %v1059 = vpop.f32.mrb[0].mxu0
  %1060 = vmatprep.mubr.f32.mxu0 0.0
  %1061 = vmatmul.mubr.f32.gmra.mrb[0].mxu0 %v861
  %v1062 = vpop.f32.mrb[0].mxu0
  %v1063 = vadd.f32 %v798, %v1062
  %v1064 = vpop.f32.mrb[0].mxu0
  %1065 = vmatprep.mubr.f32.mxu0 0.0
  %1066 = vmatmul.mubr.f32.gmra.mrb[0].mxu0 %v864
  %v1067 = vpop.f32.mrb[0].mxu0
  %v1068 = vadd.f32 %v798, %v1067
  %v1069 = vpop.f32.mrb[0].mxu0
  %1070 = vmatprep.mubr.f32.mxu0 0.0
  %1071 = vmatmul.mubr.f32.gmra.mrb[0].mxu0 %v867
  %v1072 = vpop.f32.mrb[0].mxu0
  %v1073 = vadd.f32 %v798, %v1072
  %v1074 = vpop.f32.mrb[0].mxu0
  %1075 = vmatprep.mubr.f32.mxu0 0.0
  %1076 = vmatmul.mubr.f32.gmra.mrb[0].mxu0 %v870
  %v1077 = vpop.f32.mrb[0].mxu0
  %v1078 = vadd.f32 %v798, %v1077
  %v1079 = vpop.f32.mrb[0].mxu0
  %1080 = vmatprep.mubr.f32.mxu0 0.0
  %1081 = vmatmul.mubr.f32.gmra.mrb[0].mxu0 %v873
  %v1082 = vpop.f32.mrb[0].mxu0
  %v1083 = vadd.f32 %v798, %v1082
  %v1084 = vpop.f32.mrb[0].mxu0
  %1085 = vmatprep.mubr.f32.mxu0 0.0
  %1086 = vmatmul.mubr.f32.gmra.mrb[0].mxu0 %v876
  %v1087 = vpop.f32.mrb[0].mxu0
  %v1088 = vadd.f32 %v798, %v1087
  %v1089 = vpop.f32.mrb[0].mxu0
  %1090 = vmatprep.mubr.f32.mxu0 0.0
  %1091 = vmatmul.mubr.f32.gmra.mrb[0].mxu0 %v879
  %v1092 = vpop.f32.mrb[0].mxu0
  %v1093 = vadd.f32 %v798, %v1092
  %v1094 = vpop.f32.mrb[0].mxu0
  %1095 = vmatprep.mubr.f32.mxu0 0.0
  %1096 = vmatmul.mubr.f32.gmra.mrb[0].mxu0 %v882
  %v1097 = vpop.f32.mrb[0].mxu0
  %v1098 = vadd.f32 %v798, %v1097
  %v1099 = vpop.f32.mrb[0].mxu0
  %1100 = vmatprep.mubr.f32.mxu0 0.0
  %1101 = vmatmul.mubr.f32.gmra.mrb[0].mxu0 %v885
  %v1102 = vpop.f32.mrb[0].mxu0
  %v1103 = vadd.f32 %v798, %v1102
  %v1104 = vpop.f32.mrb[0].mxu0
  %1105 = vmatprep.mubr.f32.mxu0 0.0
  %1106 = vmatmul.mubr.f32.gmra.mrb[0].mxu0 %v888
  %v1107 = vpop.f32.mrb[0].mxu0
  %v1108 = vadd.f32 %v798, %v1107
  %v1109 = vpop.f32.mrb[0].mxu0
  %1110 = vmatprep.mubr.f32.mxu0 0.0
  %1111 = vmatmul.mubr.f32.gmra.mrb[0].mxu0 %v891
  %v1112 = vpop.f32.mrb[0].mxu0
  %v1113 = vadd.f32 %v798, %v1112
  %v1114 = vpop.f32.mrb[0].mxu0
  %1115 = vmatprep.mubr.f32.mxu0 0.0
  %1116 = vmatmul.mubr.f32.gmra.mrb[0].mxu0 %v894
  %v1117 = vpop.f32.mrb[0].mxu0
  %v1118 = vadd.f32 %v798, %v1117
  %v1119 = vpop.f32.mrb[0].mxu0
  %1120 = vdwg.mxu0
  %v1121 = vmax.f32 %v963, -20.0
  %v1122 = vmax.f32 %v968, -20.0
  %v1123 = vmax.f32 %v973, -20.0
  %v1124 = vmax.f32 %v978, -20.0
  %v1125 = vmax.f32 %v983, -20.0
  %v1126 = vmax.f32 %v988, -20.0
  %v1127 = vmax.f32 %v993, -20.0
  %v1128 = vmax.f32 %v998, -20.0
  %v1129 = vmax.f32 %v1003, -20.0
  %v1130 = vmax.f32 %v1008, -20.0
  %v1131 = vmax.f32 %v1013, -20.0
  %v1132 = vmax.f32 %v1018, -20.0
  %v1133 = vmax.f32 %v1023, -20.0
  %v1134 = vmax.f32 %v1028, -20.0
  %v1135 = vmax.f32 %v1033, -20.0
  %v1136 = vmax.f32 %v1038, -20.0
  %v1137 = vmax.f32 %v1043, -20.0
  %v1138 = vmax.f32 %v1048, -20.0
  %v1139 = vmax.f32 %v1053, -20.0
  %v1140 = vmax.f32 %v1058, -20.0
  %v1141 = vmax.f32 %v1063, -20.0
  %v1142 = vmax.f32 %v1068, -20.0
  %v1143 = vmax.f32 %v1073, -20.0
  %v1144 = vmax.f32 %v1078, -20.0
  %v1145 = vmax.f32 %v1083, -20.0
  %v1146 = vmax.f32 %v1088, -20.0
  %v1147 = vmax.f32 %v1093, -20.0
  %v1148 = vmax.f32 %v1098, -20.0
  %v1149 = vmax.f32 %v1103, -20.0
  %v1150 = vmax.f32 %v1108, -20.0
  %v1151 = vmax.f32 %v1113, -20.0
  %v1152 = vmax.f32 %v1118, -20.0
  %v1153 = vmin.f32 %v1121, 2.0
  %v1154 = vmin.f32 %v1122, 2.0
  %v1155 = vmin.f32 %v1123, 2.0
  %v1156 = vmin.f32 %v1124, 2.0
  %v1157 = vmin.f32 %v1125, 2.0
  %v1158 = vmin.f32 %v1126, 2.0
  %v1159 = vmin.f32 %v1127, 2.0
  %v1160 = vmin.f32 %v1128, 2.0
  %v1161 = vmin.f32 %v1129, 2.0
  %v1162 = vmin.f32 %v1130, 2.0
  %v1163 = vmin.f32 %v1131, 2.0
  %v1164 = vmin.f32 %v1132, 2.0
  %v1165 = vmin.f32 %v1133, 2.0
  %v1166 = vmin.f32 %v1134, 2.0
  %v1167 = vmin.f32 %v1135, 2.0
  %v1168 = vmin.f32 %v1136, 2.0
  %v1169 = vmin.f32 %v1137, 2.0
  %v1170 = vmin.f32 %v1138, 2.0
  %v1171 = vmin.f32 %v1139, 2.0
  %v1172 = vmin.f32 %v1140, 2.0
  %v1173 = vmin.f32 %v1141, 2.0
  %v1174 = vmin.f32 %v1142, 2.0
  %v1175 = vmin.f32 %v1143, 2.0
  %v1176 = vmin.f32 %v1144, 2.0
  %v1177 = vmin.f32 %v1145, 2.0
  %v1178 = vmin.f32 %v1146, 2.0
  %v1179 = vmin.f32 %v1147, 2.0
  %v1180 = vmin.f32 %v1148, 2.0
  %v1181 = vmin.f32 %v1149, 2.0
  %v1182 = vmin.f32 %v1150, 2.0
  %v1183 = vmin.f32 %v1151, 2.0
  %v1184 = vmin.f32 %v1152, 2.0
  %v1185 = vmul.f32 %v1153, 1.442695
  %v1186 = vpow.pop %v1185
  %v1187 = vmul.f32 %v1154, 1.442695
  %v1188 = vpow.pop %v1187
  %v1189 = vmul.f32 %v1155, 1.442695
  %v1190 = vpow.pop %v1189
  %v1191 = vmul.f32 %v1156, 1.442695
  %v1192 = vpow.pop %v1191
  %v1193 = vmul.f32 %v1157, 1.442695
  %v1194 = vpow.pop %v1193
  %v1195 = vmul.f32 %v1158, 1.442695
  %v1196 = vpow.pop %v1195
  %v1197 = vmul.f32 %v1159, 1.442695
  %v1198 = vpow.pop %v1197
  %v1199 = vmul.f32 %v1160, 1.442695
  %v1200 = vpow.pop %v1199
  %v1201 = vmul.f32 %v1161, 1.442695
  %v1202 = vpow.pop %v1201
  %v1203 = vmul.f32 %v1162, 1.442695
  %v1204 = vpow.pop %v1203
  %v1205 = vmul.f32 %v1163, 1.442695
  %v1206 = vpow.pop %v1205
  %v1207 = vmul.f32 %v1164, 1.442695
  %v1208 = vpow.pop %v1207
  %v1209 = vmul.f32 %v1165, 1.442695
  %v1210 = vpow.pop %v1209
  %v1211 = vmul.f32 %v1166, 1.442695
  %v1212 = vpow.pop %v1211
  %v1213 = vmul.f32 %v1167, 1.442695
  %v1214 = vpow.pop %v1213
  %v1215 = vmul.f32 %v1168, 1.442695
  %v1216 = vpow.pop %v1215
  %v1217 = vmul.f32 %v1169, 1.442695
  %v1218 = vpow.pop %v1217
  %v1219 = vmul.f32 %v1170, 1.442695
  %v1220 = vpow.pop %v1219
  %v1221 = vmul.f32 %v1171, 1.442695
  %v1222 = vpow.pop %v1221
  %v1223 = vmul.f32 %v1172, 1.442695
  %v1224 = vpow.pop %v1223
  %v1225 = vmul.f32 %v1173, 1.442695
  %v1226 = vpow.pop %v1225
  %v1227 = vmul.f32 %v1174, 1.442695
  %v1228 = vpow.pop %v1227
  %v1229 = vmul.f32 %v1175, 1.442695
  %v1230 = vpow.pop %v1229
  %v1231 = vmul.f32 %v1176, 1.442695
  %v1232 = vpow.pop %v1231
  %v1233 = vmul.f32 %v1177, 1.442695
  %v1234 = vpow.pop %v1233
  %v1235 = vmul.f32 %v1178, 1.442695
  %v1236 = vpow.pop %v1235
  %v1237 = vmul.f32 %v1179, 1.442695
  %v1238 = vpow.pop %v1237
  %v1239 = vmul.f32 %v1180, 1.442695
  %v1240 = vpow.pop %v1239
  %v1241 = vmul.f32 %v1181, 1.442695
  %v1242 = vpow.pop %v1241
  %v1243 = vmul.f32 %v1182, 1.442695
  %v1244 = vpow.pop %v1243
  %v1245 = vmul.f32 %v1183, 1.442695
  %v1246 = vpow.pop %v1245
  %v1247 = vmul.f32 %v1184, 1.442695
  %v1248 = vpow.pop %v1247
  %v1249 = vlaneseq
  %v1250 = vand.u32 %v1249, 127
  %vm1251 = vcmp.ge.s32.totalorder %v1250, 1
  %v1252 = vsel %vm1251, %v1186, %v963
  %v1253 = vsel %vm1251, %v1188, %v968
  %v1254 = vsel %vm1251, %v1190, %v973
  %v1255 = vsel %vm1251, %v1192, %v978
  %v1256 = vsel %vm1251, %v1194, %v983
  %v1257 = vsel %vm1251, %v1196, %v988
  %v1258 = vsel %vm1251, %v1198, %v993
  %v1259 = vsel %vm1251, %v1200, %v998
  %v1260 = vsel %vm1251, %v1202, %v1003
  %v1261 = vsel %vm1251, %v1204, %v1008
  %v1262 = vsel %vm1251, %v1206, %v1013
  %v1263 = vsel %vm1251, %v1208, %v1018
  %v1264 = vsel %vm1251, %v1210, %v1023
  %v1265 = vsel %vm1251, %v1212, %v1028
  %v1266 = vsel %vm1251, %v1214, %v1033
  %v1267 = vsel %vm1251, %v1216, %v1038
  %v1268 = vsel %vm1251, %v1218, %v1043
  %v1269 = vsel %vm1251, %v1220, %v1048
  %v1270 = vsel %vm1251, %v1222, %v1053
  %v1271 = vsel %vm1251, %v1224, %v1058
  %v1272 = vsel %vm1251, %v1226, %v1063
  %v1273 = vsel %vm1251, %v1228, %v1068
  %v1274 = vsel %vm1251, %v1230, %v1073
  %v1275 = vsel %vm1251, %v1232, %v1078
  %v1276 = vsel %vm1251, %v1234, %v1083
  %v1277 = vsel %vm1251, %v1236, %v1088
  %v1278 = vsel %vm1251, %v1238, %v1093
  %v1279 = vsel %vm1251, %v1240, %v1098
  %v1280 = vsel %vm1251, %v1242, %v1103
  %v1281 = vsel %vm1251, %v1244, %v1108
  %v1282 = vsel %vm1251, %v1246, %v1113
  %v1283 = vsel %vm1251, %v1248, %v1118
  %vm1284 = vcmask 15360
  %1285 = vst.msk [vmem:[%s7] sm:$0xff] %vm1284, %v1252
  %1286 = vst.msk [vmem:[%s7 + $0x8] sm:$0xff] %vm1284, %v1253
  %1287 = vst.msk [vmem:[%s7 + $0x10] sm:$0xff] %vm1284, %v1254
  %1288 = vst.msk [vmem:[%s7 + $0x18] sm:$0xff] %vm1284, %v1255
  %1289 = vst.msk [vmem:[%s7 + $0x20] sm:$0xff] %vm1284, %v1256
  %1290 = vst.msk [vmem:[%s7 + $0x28] sm:$0xff] %vm1284, %v1257
  %1291 = vst.msk [vmem:[%s7 + $0x30] sm:$0xff] %vm1284, %v1258
  %1292 = vst.msk [vmem:[%s7 + $0x38] sm:$0xff] %vm1284, %v1259
  %1293 = vst.msk [vmem:[%s7 + $0x40] sm:$0xff] %vm1284, %v1260
  %1294 = vst.msk [vmem:[%s7 + $0x48] sm:$0xff] %vm1284, %v1261
  %1295 = vst.msk [vmem:[%s7 + $0x50] sm:$0xff] %vm1284, %v1262
  %1296 = vst.msk [vmem:[%s7 + $0x58] sm:$0xff] %vm1284, %v1263
  %1297 = vst.msk [vmem:[%s7 + $0x60] sm:$0xff] %vm1284, %v1264
  %1298 = vst.msk [vmem:[%s7 + $0x68] sm:$0xff] %vm1284, %v1265
  %1299 = vst.msk [vmem:[%s7 + $0x70] sm:$0xff] %vm1284, %v1266
  %1300 = vst.msk [vmem:[%s7 + $0x78] sm:$0xff] %vm1284, %v1267
  %1301 = vst.msk [vmem:[%s7 + $0x80] sm:$0xff] %vm1284, %v1268
  %1302 = vst.msk [vmem:[%s7 + $0x88] sm:$0xff] %vm1284, %v1269
  %1303 = vst.msk [vmem:[%s7 + $0x90] sm:$0xff] %vm1284, %v1270
  %1304 = vst.msk [vmem:[%s7 + $0x98] sm:$0xff] %vm1284, %v1271
  %1305 = vst.msk [vmem:[%s7 + $0xa0] sm:$0xff] %vm1284, %v1272
  %1306 = vst.msk [vmem:[%s7 + $0xa8] sm:$0xff] %vm1284, %v1273
  %1307 = vst.msk [vmem:[%s7 + $0xb0] sm:$0xff] %vm1284, %v1274
  %1308 = vst.msk [vmem:[%s7 + $0xb8] sm:$0xff] %vm1284, %v1275
  %1309 = vst.msk [vmem:[%s7 + $0xc0] sm:$0xff] %vm1284, %v1276
  %1310 = vst.msk [vmem:[%s7 + $0xc8] sm:$0xff] %vm1284, %v1277
  %1311 = vst.msk [vmem:[%s7 + $0xd0] sm:$0xff] %vm1284, %v1278
  %1312 = vst.msk [vmem:[%s7 + $0xd8] sm:$0xff] %vm1284, %v1279
  %1313 = vst.msk [vmem:[%s7 + $0xe0] sm:$0xff] %vm1284, %v1280
  %1314 = vst.msk [vmem:[%s7 + $0xe8] sm:$0xff] %vm1284, %v1281
  %1315 = vst.msk [vmem:[%s7 + $0xf0] sm:$0xff] %vm1284, %v1282
  %1316 = vst.msk [vmem:[%s7 + $0xf8] sm:$0xff] %vm1284, %v1283
  // Predicated region
  $region30: #{tpu_custom_call.1} parent=0 // pred_check
    _
  $region31: #{tpu_custom_call.1} parent=0 // pred_check_branch
    %1318 = sbr.rel (0) target = $region33
  $region32: #{tpu_custom_call.1} parent=0 // pred_region
    _
  $region33: #{tpu_custom_call.1} parent=0 // pred_fallthru
    _
  // Predicated region
  $region34: #{tpu_custom_call.1} parent=0 // pred_check
    _
  $region35: #{tpu_custom_call.1} parent=0 // pred_check_branch
    %1320 = sbr.rel (0) target = $region37
  $region36: #{tpu_custom_call.1} parent=0 // pred_region
    _
  $region37: #{tpu_custom_call.1} parent=0 // pred_fallthru
    _

</llo_original>
